<compile_context>
chip_gen: v7x
topology: tpu7x:2x2x1
jax: 0.10.0
libtpu: 0.0.40
codegen_flags: <defaults>
</compile_context>

<pallas_src>
import jax
import jax.numpy as jnp
from jax import lax
from jax.experimental import pallas as pl
from jax.experimental.pallas import tpu as pltpu  # noqa: F401


def rnn_kernel(x_ref, h0_ref, wih_ref, whh_ref, bias_ref, out_ref):
    """x: (B,S,I), h0: (B,H), Wih^T: (I,H), Whh^T: (H,H), bias: (1,H) -> out: (B,S,H)."""
    B, S, I = x_ref.shape
    H = whh_ref.shape[0]

    # ---- Phase 1 (hoisted): x_t @ W_ih^T + (b_ih + b_hh) for every timestep
    # computed as one MXU matmul; result lands directly in the output VMEM block.
    x_flat = x_ref[...].reshape(B * S, I)               # leading-dim collapse
    xw = jnp.dot(x_flat, wih_ref[...], preferred_element_type=jnp.float32)
    out_ref[...] = (xw + bias_ref[...]).reshape(B, S, H).astype(out_ref.dtype)

    # ---- Phase 2: recurrence. Only h @ W_hh^T + tanh sits on the serial path.
    whh = whh_ref[...]
    h = h0_ref[...].astype(jnp.float32)
    # S is static at trace time and small -> fully unrolled, static indexing.
    # TODO(synk): for long sequences, chunk time over an 'arbitrary' grid axis
    # with a VMEM-resident hidden-state scratch instead of full unrolling.
    for t in range(S):
        pre = out_ref[:, t, :].astype(jnp.float32) + jnp.dot(
            h, whh, preferred_element_type=jnp.float32)
        h = jnp.tanh(pre)
        out_ref[:, t, :] = h.astype(out_ref.dtype)


def rnn_forward(x, hidden, w_ih, w_hh, b_ih, b_hh, *, num_classes):
    """Mirrors Model.forward: returns (hidden, out) with
       hidden: (num_layers=1, B, H) and out: (B*S, num_classes)."""
    B, S, I = x.shape
    H = w_hh.shape[0]
    assert num_classes == H, "out.view(-1, num_classes) requires num_classes == hidden_size"

    h0 = hidden[0]                        # (B, H)   (num_layers == 1)
    wih_t = jnp.transpose(w_ih)           # (I, H)
    whh_t = jnp.transpose(w_hh)           # (H, H)
    bias = (b_ih + b_hh).reshape(1, H)    # single combined bias

    out_bsh = pl.pallas_call(
        rnn_kernel,
        out_shape=jax.ShapeDtypeStruct((B, S, H), jnp.float32),
    )(x, h0, wih_t, whh_t, bias)

    hidden_out = out_bsh[:, -1, :][None]          # (1, B, H) == final hidden state
    out = out_bsh.reshape(-1, num_classes)        # out.view(-1, num_classes)
    return hidden_out, out


rnn_forward_jit = jax.jit(rnn_forward, static_argnames=("num_classes",))


def rnn_reference(x, hidden, w_ih, w_hh, b_ih, b_hh):
    """Pure-JAX reference (matches torch.nn.RNN with tanh nonlinearity)."""
    def step(h, x_t):
        h_new = jnp.tanh(x_t @ w_ih.T + b_ih + h @ w_hh.T + b_hh)
        return h_new, h_new
    h0 = hidden[0]
    x_tm = jnp.transpose(x, (1, 0, 2))
    h_last, out_tm = lax.scan(step, h0, x_tm)
    return h_last[None], jnp.transpose(out_tm, (1, 0, 2))


if __name__ == "__main__":
    batch_size = 2
    sequence_length = 8
    input_size = 16
    hidden_size = 32
    num_layers = 1
    num_classes = hidden_size   # required by out.view(-1, num_classes)

    key = jax.random.PRNGKey(0)
    kx, kwih, kwhh, kbih, kbhh = jax.random.split(key, 5)

    x = jax.random.normal(kx, (batch_size, sequence_length, input_size), jnp.float32)
    hidden = jnp.zeros((num_layers, batch_size, hidden_size), jnp.float32)  # init_hidden()

    # Deterministic parameter init (shapes match nn.RNN: W_ih (H, I), W_hh (H, H))
    scale = 1.0 / jnp.sqrt(hidden_size)
    w_ih = jax.random.uniform(kwih, (hidden_size, input_size), jnp.float32, -scale, scale)
    w_hh = jax.random.uniform(kwhh, (hidden_size, hidden_size), jnp.float32, -scale, scale)
    b_ih = jax.random.uniform(kbih, (hidden_size,), jnp.float32, -scale, scale)
    b_hh = jax.random.uniform(kbhh, (hidden_size,), jnp.float32, -scale, scale)

    hidden_out, out = rnn_forward_jit(x, hidden, w_ih, w_hh, b_ih, b_hh,
                                      num_classes=num_classes)
    jax.block_until_ready((hidden_out, out))

    # Verify against pure-JAX reference.
    h_exp, out_exp_full = rnn_reference(x, hidden, w_ih, w_hh, b_ih, b_hh)
    out_exp = out_exp_full.reshape(-1, num_classes)
    assert hidden_out.shape == (num_layers, batch_size, hidden_size)
    assert out.shape == (batch_size * sequence_length, num_classes)
    assert jnp.allclose(hidden_out, h_exp, atol=1e-5)
    assert jnp.allclose(out, out_exp, atol=1e-5)

    print("KERNEL_OK")
</pallas_src>

<mosaic_0001>
module attributes {stable_mosaic.version = 11 : i64} {
  func.func @rnn_kernel(%arg0: memref<2x8x16xf32, #tpu.memory_space<vmem>>, %arg1: memref<2x32xf32, #tpu.memory_space<vmem>>, %arg2: memref<16x32xf32, #tpu.memory_space<vmem>>, %arg3: memref<32x32xf32, #tpu.memory_space<vmem>>, %arg4: memref<1x32xf32, #tpu.memory_space<vmem>>, %arg5: memref<2x8x32xf32, #tpu.memory_space<vmem>>) attributes {dimension_semantics = [], scalar_prefetch = 0 : i64, scratch_operands = 0 : i64, tpu.core_type = #tpu.core_type<tc>} {
    %c0 = arith.constant 0 : index
    %c0_0 = arith.constant 0 : index
    %c0_1 = arith.constant 0 : index
    %0 = vector.load %arg0[%c0, %c0_0, %c0_1] : memref<2x8x16xf32, #tpu.memory_space<vmem>>, vector<2x8x16xf32>
    %1 = vector.shape_cast %0 : vector<2x8x16xf32> to vector<16x16xf32>
    %c0_2 = arith.constant 0 : index
    %c0_3 = arith.constant 0 : index
    %2 = vector.load %arg2[%c0_2, %c0_3] : memref<16x32xf32, #tpu.memory_space<vmem>>, vector<16x32xf32>
    %cst = arith.constant dense<0.000000e+00> : vector<16x32xf32>
    %3 = tpu.matmul %1, %2, %cst {dimension_numbers = #tpu.dot_dimension_numbers<[1], [0], [0], [1], [0, 0, 1, 1], [], []>} : vector<16x16xf32>, vector<16x32xf32>, vector<16x32xf32> -> vector<16x32xf32>
    %c0_4 = arith.constant 0 : index
    %c0_5 = arith.constant 0 : index
    %4 = vector.load %arg4[%c0_4, %c0_5] : memref<1x32xf32, #tpu.memory_space<vmem>>, vector<1x32xf32>
    %5 = vector.broadcast %4 : vector<1x32xf32> to vector<16x32xf32>
    %6 = arith.addf %3, %5 : vector<16x32xf32>
    %7 = vector.shape_cast %6 : vector<16x32xf32> to vector<2x8x32xf32>
    %c0_6 = arith.constant 0 : index
    %c0_7 = arith.constant 0 : index
    %c0_8 = arith.constant 0 : index
    %8 = vector.load %arg5[%c0_6, %c0_7, %c0_8] : memref<2x8x32xf32, #tpu.memory_space<vmem>>, vector<2x8x32xf32>
    tpu.vector_store %arg5[%c0_6, %c0_7, %c0_8], %7 {strides = array<i32>} : memref<2x8x32xf32, #tpu.memory_space<vmem>>, vector<2x8x32xf32>,
    %c0_9 = arith.constant 0 : index
    %c0_10 = arith.constant 0 : index
    %9 = vector.load %arg3[%c0_9, %c0_10] : memref<32x32xf32, #tpu.memory_space<vmem>>, vector<32x32xf32>
    %c0_11 = arith.constant 0 : index
    %c0_12 = arith.constant 0 : index
    %10 = vector.load %arg1[%c0_11, %c0_12] : memref<2x32xf32, #tpu.memory_space<vmem>>, vector<2x32xf32>
    %c0_13 = arith.constant 0 : index
    %c0_14 = arith.constant 0 : index
    %c0_15 = arith.constant 0 : index
    %11 = vector.load %arg5[%c0_13, %c0_14, %c0_15] : memref<2x8x32xf32, #tpu.memory_space<vmem>>, vector<2x1x32xf32>
    %12 = vector.shape_cast %11 : vector<2x1x32xf32> to vector<2x32xf32>
    %cst_16 = arith.constant dense<0.000000e+00> : vector<2x32xf32>
    %13 = tpu.matmul %10, %9, %cst_16 {dimension_numbers = #tpu.dot_dimension_numbers<[1], [0], [0], [1], [0, 0, 1, 1], [], []>} : vector<2x32xf32>, vector<32x32xf32>, vector<2x32xf32> -> vector<2x32xf32>
    %14 = arith.addf %12, %13 : vector<2x32xf32>
    %15 = math.tanh %14 : vector<2x32xf32>
    %c0_17 = arith.constant 0 : index
    %c0_18 = arith.constant 0 : index
    %c0_19 = arith.constant 0 : index
    %16 = vector.load %arg5[%c0_17, %c0_18, %c0_19] : memref<2x8x32xf32, #tpu.memory_space<vmem>>, vector<2x1x32xf32>
    %17 = vector.shape_cast %16 : vector<2x1x32xf32> to vector<2x32xf32>
    %18 = vector.shape_cast %15 : vector<2x32xf32> to vector<2x1x32xf32>
    tpu.vector_store %arg5[%c0_17, %c0_18, %c0_19], %18 {strides = array<i32>} : memref<2x8x32xf32, #tpu.memory_space<vmem>>, vector<2x1x32xf32>,
    %c0_20 = arith.constant 0 : index
    %c1 = arith.constant 1 : index
    %c0_21 = arith.constant 0 : index
    %19 = vector.load %arg5[%c0_20, %c1, %c0_21] : memref<2x8x32xf32, #tpu.memory_space<vmem>>, vector<2x1x32xf32>
    %20 = vector.shape_cast %19 : vector<2x1x32xf32> to vector<2x32xf32>
    %cst_22 = arith.constant dense<0.000000e+00> : vector<2x32xf32>
    %21 = tpu.matmul %15, %9, %cst_22 {dimension_numbers = #tpu.dot_dimension_numbers<[1], [0], [0], [1], [0, 0, 1, 1], [], []>} : vector<2x32xf32>, vector<32x32xf32>, vector<2x32xf32> -> vector<2x32xf32>
    %22 = arith.addf %20, %21 : vector<2x32xf32>
    %23 = math.tanh %22 : vector<2x32xf32>
    %c0_23 = arith.constant 0 : index
    %c1_24 = arith.constant 1 : index
    %c0_25 = arith.constant 0 : index
    %24 = vector.load %arg5[%c0_23, %c1_24, %c0_25] : memref<2x8x32xf32, #tpu.memory_space<vmem>>, vector<2x1x32xf32>
    %25 = vector.shape_cast %24 : vector<2x1x32xf32> to vector<2x32xf32>
    %26 = vector.shape_cast %23 : vector<2x32xf32> to vector<2x1x32xf32>
    tpu.vector_store %arg5[%c0_23, %c1_24, %c0_25], %26 {strides = array<i32>} : memref<2x8x32xf32, #tpu.memory_space<vmem>>, vector<2x1x32xf32>,
    %c0_26 = arith.constant 0 : index
    %c2 = arith.constant 2 : index
    %c0_27 = arith.constant 0 : index
    %27 = vector.load %arg5[%c0_26, %c2, %c0_27] : memref<2x8x32xf32, #tpu.memory_space<vmem>>, vector<2x1x32xf32>
    %28 = vector.shape_cast %27 : vector<2x1x32xf32> to vector<2x32xf32>
    %cst_28 = arith.constant dense<0.000000e+00> : vector<2x32xf32>
    %29 = tpu.matmul %23, %9, %cst_28 {dimension_numbers = #tpu.dot_dimension_numbers<[1], [0], [0], [1], [0, 0, 1, 1], [], []>} : vector<2x32xf32>, vector<32x32xf32>, vector<2x32xf32> -> vector<2x32xf32>
    %30 = arith.addf %28, %29 : vector<2x32xf32>
    %31 = math.tanh %30 : vector<2x32xf32>
    %c0_29 = arith.constant 0 : index
    %c2_30 = arith.constant 2 : index
    %c0_31 = arith.constant 0 : index
    %32 = vector.load %arg5[%c0_29, %c2_30, %c0_31] : memref<2x8x32xf32, #tpu.memory_space<vmem>>, vector<2x1x32xf32>
    %33 = vector.shape_cast %32 : vector<2x1x32xf32> to vector<2x32xf32>
    %34 = vector.shape_cast %31 : vector<2x32xf32> to vector<2x1x32xf32>
    tpu.vector_store %arg5[%c0_29, %c2_30, %c0_31], %34 {strides = array<i32>} : memref<2x8x32xf32, #tpu.memory_space<vmem>>, vector<2x1x32xf32>,
    %c0_32 = arith.constant 0 : index
    %c3 = arith.constant 3 : index
    %c0_33 = arith.constant 0 : index
    %35 = vector.load %arg5[%c0_32, %c3, %c0_33] : memref<2x8x32xf32, #tpu.memory_space<vmem>>, vector<2x1x32xf32>
    %36 = vector.shape_cast %35 : vector<2x1x32xf32> to vector<2x32xf32>
    %cst_34 = arith.constant dense<0.000000e+00> : vector<2x32xf32>
    %37 = tpu.matmul %31, %9, %cst_34 {dimension_numbers = #tpu.dot_dimension_numbers<[1], [0], [0], [1], [0, 0, 1, 1], [], []>} : vector<2x32xf32>, vector<32x32xf32>, vector<2x32xf32> -> vector<2x32xf32>
    %38 = arith.addf %36, %37 : vector<2x32xf32>
    %39 = math.tanh %38 : vector<2x32xf32>
    %c0_35 = arith.constant 0 : index
    %c3_36 = arith.constant 3 : index
    %c0_37 = arith.constant 0 : index
    %40 = vector.load %arg5[%c0_35, %c3_36, %c0_37] : memref<2x8x32xf32, #tpu.memory_space<vmem>>, vector<2x1x32xf32>
    %41 = vector.shape_cast %40 : vector<2x1x32xf32> to vector<2x32xf32>
    %42 = vector.shape_cast %39 : vector<2x32xf32> to vector<2x1x32xf32>
    tpu.vector_store %arg5[%c0_35, %c3_36, %c0_37], %42 {strides = array<i32>} : memref<2x8x32xf32, #tpu.memory_space<vmem>>, vector<2x1x32xf32>,
    %c0_38 = arith.constant 0 : index
    %c4 = arith.constant 4 : index
    %c0_39 = arith.constant 0 : index
    %43 = vector.load %arg5[%c0_38, %c4, %c0_39] : memref<2x8x32xf32, #tpu.memory_space<vmem>>, vector<2x1x32xf32>
    %44 = vector.shape_cast %43 : vector<2x1x32xf32> to vector<2x32xf32>
    %cst_40 = arith.constant dense<0.000000e+00> : vector<2x32xf32>
    %45 = tpu.matmul %39, %9, %cst_40 {dimension_numbers = #tpu.dot_dimension_numbers<[1], [0], [0], [1], [0, 0, 1, 1], [], []>} : vector<2x32xf32>, vector<32x32xf32>, vector<2x32xf32> -> vector<2x32xf32>
    %46 = arith.addf %44, %45 : vector<2x32xf32>
    %47 = math.tanh %46 : vector<2x32xf32>
    %c0_41 = arith.constant 0 : index
    %c4_42 = arith.constant 4 : index
    %c0_43 = arith.constant 0 : index
    %48 = vector.load %arg5[%c0_41, %c4_42, %c0_43] : memref<2x8x32xf32, #tpu.memory_space<vmem>>, vector<2x1x32xf32>
    %49 = vector.shape_cast %48 : vector<2x1x32xf32> to vector<2x32xf32>
    %50 = vector.shape_cast %47 : vector<2x32xf32> to vector<2x1x32xf32>
    tpu.vector_store %arg5[%c0_41, %c4_42, %c0_43], %50 {strides = array<i32>} : memref<2x8x32xf32, #tpu.memory_space<vmem>>, vector<2x1x32xf32>,
    %c0_44 = arith.constant 0 : index
    %c5 = arith.constant 5 : index
    %c0_45 = arith.constant 0 : index
    %51 = vector.load %arg5[%c0_44, %c5, %c0_45] : memref<2x8x32xf32, #tpu.memory_space<vmem>>, vector<2x1x32xf32>
    %52 = vector.shape_cast %51 : vector<2x1x32xf32> to vector<2x32xf32>
    %cst_46 = arith.constant dense<0.000000e+00> : vector<2x32xf32>
    %53 = tpu.matmul %47, %9, %cst_46 {dimension_numbers = #tpu.dot_dimension_numbers<[1], [0], [0], [1], [0, 0, 1, 1], [], []>} : vector<2x32xf32>, vector<32x32xf32>, vector<2x32xf32> -> vector<2x32xf32>
    %54 = arith.addf %52, %53 : vector<2x32xf32>
    %55 = math.tanh %54 : vector<2x32xf32>
    %c0_47 = arith.constant 0 : index
    %c5_48 = arith.constant 5 : index
    %c0_49 = arith.constant 0 : index
    %56 = vector.load %arg5[%c0_47, %c5_48, %c0_49] : memref<2x8x32xf32, #tpu.memory_space<vmem>>, vector<2x1x32xf32>
    %57 = vector.shape_cast %56 : vector<2x1x32xf32> to vector<2x32xf32>
    %58 = vector.shape_cast %55 : vector<2x32xf32> to vector<2x1x32xf32>
    tpu.vector_store %arg5[%c0_47, %c5_48, %c0_49], %58 {strides = array<i32>} : memref<2x8x32xf32, #tpu.memory_space<vmem>>, vector<2x1x32xf32>,
    %c0_50 = arith.constant 0 : index
    %c6 = arith.constant 6 : index
    %c0_51 = arith.constant 0 : index
    %59 = vector.load %arg5[%c0_50, %c6, %c0_51] : memref<2x8x32xf32, #tpu.memory_space<vmem>>, vector<2x1x32xf32>
    %60 = vector.shape_cast %59 : vector<2x1x32xf32> to vector<2x32xf32>
    %cst_52 = arith.constant dense<0.000000e+00> : vector<2x32xf32>
    %61 = tpu.matmul %55, %9, %cst_52 {dimension_numbers = #tpu.dot_dimension_numbers<[1], [0], [0], [1], [0, 0, 1, 1], [], []>} : vector<2x32xf32>, vector<32x32xf32>, vector<2x32xf32> -> vector<2x32xf32>
    %62 = arith.addf %60, %61 : vector<2x32xf32>
    %63 = math.tanh %62 : vector<2x32xf32>
    %c0_53 = arith.constant 0 : index
    %c6_54 = arith.constant 6 : index
    %c0_55 = arith.constant 0 : index
    %64 = vector.load %arg5[%c0_53, %c6_54, %c0_55] : memref<2x8x32xf32, #tpu.memory_space<vmem>>, vector<2x1x32xf32>
    %65 = vector.shape_cast %64 : vector<2x1x32xf32> to vector<2x32xf32>
    %66 = vector.shape_cast %63 : vector<2x32xf32> to vector<2x1x32xf32>
    tpu.vector_store %arg5[%c0_53, %c6_54, %c0_55], %66 {strides = array<i32>} : memref<2x8x32xf32, #tpu.memory_space<vmem>>, vector<2x1x32xf32>,
    %c0_56 = arith.constant 0 : index
    %c7 = arith.constant 7 : index
    %c0_57 = arith.constant 0 : index
    %67 = vector.load %arg5[%c0_56, %c7, %c0_57] : memref<2x8x32xf32, #tpu.memory_space<vmem>>, vector<2x1x32xf32>
    %68 = vector.shape_cast %67 : vector<2x1x32xf32> to vector<2x32xf32>
    %cst_58 = arith.constant dense<0.000000e+00> : vector<2x32xf32>
    %69 = tpu.matmul %63, %9, %cst_58 {dimension_numbers = #tpu.dot_dimension_numbers<[1], [0], [0], [1], [0, 0, 1, 1], [], []>} : vector<2x32xf32>, vector<32x32xf32>, vector<2x32xf32> -> vector<2x32xf32>
    %70 = arith.addf %68, %69 : vector<2x32xf32>
    %71 = math.tanh %70 : vector<2x32xf32>
    %c0_59 = arith.constant 0 : index
    %c7_60 = arith.constant 7 : index
    %c0_61 = arith.constant 0 : index
    %72 = vector.load %arg5[%c0_59, %c7_60, %c0_61] : memref<2x8x32xf32, #tpu.memory_space<vmem>>, vector<2x1x32xf32>
    %73 = vector.shape_cast %72 : vector<2x1x32xf32> to vector<2x32xf32>
    %74 = vector.shape_cast %71 : vector<2x32xf32> to vector<2x1x32xf32>
    tpu.vector_store %arg5[%c0_59, %c7_60, %c0_61], %74 {strides = array<i32>} : memref<2x8x32xf32, #tpu.memory_space<vmem>>, vector<2x1x32xf32>,
    return
  }
}

</mosaic_0001>

<llo_original>
// kernel: rnn_forward.1
$region0: #{rnn_forward.1}
  #allocation0 [shape = 'u32[]', space=smem, size = 0x4, offset = 0x4, fixed_abs, tag = 'smem constant byte address 0x4 - core index']
  #allocation1 [shape = 'u32[144,128]{1,0:T(1,128)}', space=vmem, size = 0x12000, scoped, tag = 'internal scratch']
  %s0 = inlined_call_operand.vmem [shape: f32[2,8,16], index: 0, kind: input, shape index: {}]
  %s1 = inlined_call_operand.vmem [shape: f32[2,32], index: 1, kind: input, shape index: {}]
  %s2 = inlined_call_operand.vmem [shape: f32[16,32], index: 2, kind: input, shape index: {}]
  %s3 = inlined_call_operand.vmem [shape: f32[32,32], index: 3, kind: input, shape index: {}]
  %s4 = inlined_call_operand.vmem [shape: f32[1,32], index: 4, kind: input, shape index: {}]
  %s5 = inlined_call_operand.vmem [shape: f32[2,8,32], index: 5, kind: output, shape index: {}]
  %s6 = sld [smem:[#allocation0]]
  $region30: #{rnn_forward.1} parent=0
    _
  %s8 = ssub.s32 1, %s6
  %s9 = scalar_select 0, %s8, %s6
  // Predicated region
  $region2: #{rnn_forward.1} parent=0 // pred_check
    _
  $region3: #{rnn_forward.1} parent=0 // pred_check_branch
    %11 = sbr.rel (0) target = $region5
  $region4: #{rnn_forward.1} parent=0 // pred_region
    _
  $region5: #{rnn_forward.1} parent=0 // pred_fallthru
    _
  // Predicated region
  $region6: #{rnn_forward.1} parent=0 // pred_check
    _
  $region7: #{rnn_forward.1} parent=0 // pred_check_branch
    %13 = sbr.rel (0) target = $region9
  $region8: #{rnn_forward.1} parent=0 // pred_region
    _
  $region9: #{rnn_forward.1} parent=0 // pred_fallthru
    _
  // Predicated region
  $region10: #{rnn_forward.1} parent=0 // pred_check
    _
  $region11: #{rnn_forward.1} parent=0 // pred_check_branch
    %15 = sbr.rel (0) target = $region13
  $region12: #{rnn_forward.1} parent=0 // pred_region
    _
  $region13: #{rnn_forward.1} parent=0 // pred_fallthru
    _
  // Predicated region
  $region14: #{rnn_forward.1} parent=0 // pred_check
    _
  $region15: #{rnn_forward.1} parent=0 // pred_check_branch
    %17 = sbr.rel (0) target = $region17
  $region16: #{rnn_forward.1} parent=0 // pred_region
    _
  $region17: #{rnn_forward.1} parent=0 // pred_fallthru
    _
  // Predicated region
  $region18: #{rnn_forward.1} parent=0 // pred_check
    _
  $region19: #{rnn_forward.1} parent=0 // pred_check_branch
    %19 = sbr.rel (0) target = $region21
  $region20: #{rnn_forward.1} parent=0 // pred_region
    _
  $region21: #{rnn_forward.1} parent=0 // pred_fallthru
    _
  %v20 = vld [vmem:[%s0] sm:$0xff]
  %v21 = vld [vmem:[%s0 + $0x8] sm:$0xff]
  %v22 = vld [vmem:[%s2] sm:$0xff]
  %v23 = vld [vmem:[%s2 + $0x8] sm:$0xff]
  %v24 = vld [vmem:[%s4] sm:$0x1]
  %v26 = vlaneseq
  %v27 = vshrl.u32 %v26, 7
  %v28 = vsub.s32 0, %v27
  %v29 = vrot.slane %v24, %v28
  %vm31 = vcmask 130048
  %v33 = vsel %vm31, %v20, 0
  %v36 = vsel %vm31, %v21, 0
  %38 = vmatprep.subr.mxu0 0.0
  %39 = vmatpush1.msra.mxu0 %v22
  %40 = vmatprep.subr.mxu0 0.0
  %41 = vmatpush1.msra.mxu0 %v23
  %42 = vmatprep.subr.mxu0 0.0
  %43 = vmatpush1.msra.mxu0 0.0
  %44 = vmatprep.subr.mxu0 0.0
  %45 = vmatpush1.msra.mxu0 0.0
  %46 = vmatprep.subr.mxu0 0.0
  %47 = vmatpush1.msra.mxu0 0.0
  %48 = vmatprep.subr.mxu0 0.0
  %49 = vmatpush1.msra.mxu0 0.0
  %50 = vmatprep.subr.mxu0 0.0
  %51 = vmatpush1.msra.mxu0 0.0
  %52 = vmatprep.subr.mxu0 0.0
  %53 = vmatpush1.msra.mxu0 0.0
  %54 = vmatprep.subr.mxu0 0.0
  %55 = vmatpush1.msra.mxu0 0.0
  %56 = vmatprep.subr.mxu0 0.0
  %57 = vmatpush1.msra.mxu0 0.0
  %58 = vmatprep.subr.mxu0 0.0
  %59 = vmatpush1.msra.mxu0 0.0
  %60 = vmatprep.subr.mxu0 0.0
  %61 = vmatpush1.msra.mxu0 0.0
  %62 = vmatprep.subr.mxu0 0.0
  %63 = vmatpush1.msra.mxu0 0.0
  %64 = vmatprep.subr.mxu0 0.0
  %65 = vmatpush1.msra.mxu0 0.0
  %66 = vmatprep.subr.mxu0 0.0
  %67 = vmatpush1.msra.mxu0 0.0
  %68 = vmatprep.subr.mxu0 0.0
  %69 = vmatpush1.msra.mxu0 0.0
  %70 = vmatprep.subr.mxu0 0.0
  %71 = vmatpush1.msra.mxu0 0.0
  %72 = vmatprep.subr.mxu0 0.0
  %73 = vmatpush1.msra.mxu0 0.0
  %74 = vmatprep.subr.mxu0 0.0
  %75 = vmatpush1.msra.mxu0 0.0
  %76 = vmatprep.subr.mxu0 0.0
  %77 = vmatpush1.msra.mxu0 0.0
  %78 = vmatprep.subr.mxu0 0.0
  %79 = vmatpush1.msra.mxu0 0.0
  %80 = vmatprep.subr.mxu0 0.0
  %81 = vmatpush1.msra.mxu0 0.0
  %82 = vmatprep.subr.mxu0 0.0
  %83 = vmatpush1.msra.mxu0 0.0
  %84 = vmatprep.subr.mxu0 0.0
  %85 = vmatpush1.msra.mxu0 0.0
  %86 = vmatprep.subr.mxu0 0.0
  %87 = vmatpush1.msra.mxu0 0.0
  %88 = vmatprep.subr.mxu0 0.0
  %89 = vmatpush1.msra.mxu0 0.0
  %90 = vmatprep.subr.mxu0 0.0
  %91 = vmatpush1.msra.mxu0 0.0
  %92 = vmatprep.subr.mxu0 0.0
  %93 = vmatpush1.msra.mxu0 0.0
  %94 = vmatprep.subr.mxu0 0.0
  %95 = vmatpush1.msra.mxu0 0.0
  %96 = vmatprep.subr.mxu0 0.0
  %97 = vmatpush1.msra.mxu0 0.0
  %98 = vmatprep.subr.mxu0 0.0
  %99 = vmatpush1.msra.mxu0 0.0
  %100 = vmatprep.subr.mxu0 0.0
  %101 = vmatpush1.msra.mxu0 0.0
  %102 = vmatprep.mubr.f32.mxu0 0.0
  %103 = vmatmul.mubr.f32.gmra.mrb[0].mxu0 %v33
  %v104 = vpop.f32.mrb[0].mxu0
  %v105 = vadd.f32 %v29, %v104
  %v106 = vpop.f32.mrb[0].mxu0
  %107 = vmatprep.mubr.f32.mxu0 0.0
  %108 = vmatmul.mubr.f32.gmra.mrb[0].mxu0 %v36
  %v109 = vpop.f32.mrb[0].mxu0
  %v110 = vadd.f32 %v29, %v109
  %v111 = vpop.f32.mrb[0].mxu0
  %112 = vdwg.mxu0
  %vm113 = vcmask 261120
  %114 = vst.msk [vmem:[%s5] sm:$0xff] %vm113, %v105
  %115 = vst.msk [vmem:[%s5 + $0x8] sm:$0xff] %vm113, %v110
  %v116 = vld [vmem:[%s3] sm:$0xff]
  %v117 = vld [vmem:[%s3 + $0x8] sm:$0xff]
  %v118 = vld [vmem:[%s3 + $0x10] sm:$0xff]
  %v119 = vld [vmem:[%s3 + $0x18] sm:$0xff]
  %v120 = vld [vmem:[%s1] sm:$0x3]
  %v121 = vld [vmem:[%s5] sm:$0x1]
  %v122 = vld [vmem:[%s5 + $0x8] sm:$0x1]
  %v124 = vsel %vm113, %v120, 0
  %126 = vmatprep.subr.mxu0 0.0
  %127 = vmatpush1.msra.mxu0 %v116
  %128 = vmatprep.subr.mxu0 0.0
  %129 = vmatpush1.msra.mxu0 %v117
  %130 = vmatprep.subr.mxu0 0.0
  %131 = vmatpush1.msra.mxu0 %v118
  %132 = vmatprep.subr.mxu0 0.0
  %133 = vmatpush1.msra.mxu0 %v119
  %134 = vmatprep.subr.mxu0 0.0
  %135 = vmatpush1.msra.mxu0 0.0
  %136 = vmatprep.subr.mxu0 0.0
  %137 = vmatpush1.msra.mxu0 0.0
  %138 = vmatprep.subr.mxu0 0.0
  %139 = vmatpush1.msra.mxu0 0.0
  %140 = vmatprep.subr.mxu0 0.0
  %141 = vmatpush1.msra.mxu0 0.0
  %142 = vmatprep.subr.mxu0 0.0
  %143 = vmatpush1.msra.mxu0 0.0
  %144 = vmatprep.subr.mxu0 0.0
  %145 = vmatpush1.msra.mxu0 0.0
  %146 = vmatprep.subr.mxu0 0.0
  %147 = vmatpush1.msra.mxu0 0.0
  %148 = vmatprep.subr.mxu0 0.0
  %149 = vmatpush1.msra.mxu0 0.0
  %150 = vmatprep.subr.mxu0 0.0
  %151 = vmatpush1.msra.mxu0 0.0
  %152 = vmatprep.subr.mxu0 0.0
  %153 = vmatpush1.msra.mxu0 0.0
  %154 = vmatprep.subr.mxu0 0.0
  %155 = vmatpush1.msra.mxu0 0.0
  %156 = vmatprep.subr.mxu0 0.0
  %157 = vmatpush1.msra.mxu0 0.0
  %158 = vmatprep.subr.mxu0 0.0
  %159 = vmatpush1.msra.mxu0 0.0
  %160 = vmatprep.subr.mxu0 0.0
  %161 = vmatpush1.msra.mxu0 0.0
  %162 = vmatprep.subr.mxu0 0.0
  %163 = vmatpush1.msra.mxu0 0.0
  %164 = vmatprep.subr.mxu0 0.0
  %165 = vmatpush1.msra.mxu0 0.0
  %166 = vmatprep.subr.mxu0 0.0
  %167 = vmatpush1.msra.mxu0 0.0
  %168 = vmatprep.subr.mxu0 0.0
  %169 = vmatpush1.msra.mxu0 0.0
  %170 = vmatprep.subr.mxu0 0.0
  %171 = vmatpush1.msra.mxu0 0.0
  %172 = vmatprep.subr.mxu0 0.0
  %173 = vmatpush1.msra.mxu0 0.0
  %174 = vmatprep.subr.mxu0 0.0
  %175 = vmatpush1.msra.mxu0 0.0
  %176 = vmatprep.subr.mxu0 0.0
  %177 = vmatpush1.msra.mxu0 0.0
  %178 = vmatprep.subr.mxu0 0.0
  %179 = vmatpush1.msra.mxu0 0.0
  %180 = vmatprep.subr.mxu0 0.0
  %181 = vmatpush1.msra.mxu0 0.0
  %182 = vmatprep.subr.mxu0 0.0
  %183 = vmatpush1.msra.mxu0 0.0
  %184 = vmatprep.subr.mxu0 0.0
  %185 = vmatpush1.msra.mxu0 0.0
  %186 = vmatprep.subr.mxu0 0.0
  %187 = vmatpush1.msra.mxu0 0.0
  %188 = vmatprep.subr.mxu0 0.0
  %189 = vmatpush1.msra.mxu0 0.0
  %190 = vmatprep.mubr.f32.mxu0 0.0
  %191 = vmatmul.mubr.f32.gmra.mrb[0].mxu0 %v124
  %v192 = vpop.f32.mrb[0].mxu0
  %v193 = vadd.f32 0.0, %v192
  %v194 = vpop.f32.mrb[0].mxu0
  %195 = vdwg.mxu0
  %v197 = vrot.slane %v193, 1
  %v200 = vadd.f32 %v121, %v193
  %v201 = vadd.f32 %v122, %v197
  %v202 = vtanh.pop %v200
  %v203 = vtanh.pop %v201
  %vm204 = vcmask 253952
  %205 = vst.msk [vmem:[%s5] sm:$0x1] %vm204, %v202
  %206 = vst.msk [vmem:[%s5 + $0x8] sm:$0x1] %vm204, %v203
  %v207 = vld [vmem:[%s5 + $0x1] sm:$0x1]
  %v208 = vld [vmem:[%s5 + $0x9] sm:$0x1]
  %v211 = vrot.slane %v203, 7
  %vm212 = vcmask 1041409
  %v213 = vsel %vm212, %v211, %v202
  %v214 = vsel %vm113, %v213, 0
  %216 = vmatprep.subr.mxu0 0.0
  %217 = vmatpush1.msra.mxu0 %v116
  %218 = vmatprep.subr.mxu0 0.0
  %219 = vmatpush1.msra.mxu0 %v117
  %220 = vmatprep.subr.mxu0 0.0
  %221 = vmatpush1.msra.mxu0 %v118
  %222 = vmatprep.subr.mxu0 0.0
  %223 = vmatpush1.msra.mxu0 %v119
  %224 = vmatprep.subr.mxu0 0.0
  %225 = vmatpush1.msra.mxu0 0.0
  %226 = vmatprep.subr.mxu0 0.0
  %227 = vmatpush1.msra.mxu0 0.0
  %228 = vmatprep.subr.mxu0 0.0
  %229 = vmatpush1.msra.mxu0 0.0
  %230 = vmatprep.subr.mxu0 0.0
  %231 = vmatpush1.msra.mxu0 0.0
  %232 = vmatprep.subr.mxu0 0.0
  %233 = vmatpush1.msra.mxu0 0.0
  %234 = vmatprep.subr.mxu0 0.0
  %235 = vmatpush1.msra.mxu0 0.0
  %236 = vmatprep.subr.mxu0 0.0
  %237 = vmatpush1.msra.mxu0 0.0
  %238 = vmatprep.subr.mxu0 0.0
  %239 = vmatpush1.msra.mxu0 0.0
  %240 = vmatprep.subr.mxu0 0.0
  %241 = vmatpush1.msra.mxu0 0.0
  %242 = vmatprep.subr.mxu0 0.0
  %243 = vmatpush1.msra.mxu0 0.0
  %244 = vmatprep.subr.mxu0 0.0
  %245 = vmatpush1.msra.mxu0 0.0
  %246 = vmatprep.subr.mxu0 0.0
  %247 = vmatpush1.msra.mxu0 0.0
  %248 = vmatprep.subr.mxu0 0.0
  %249 = vmatpush1.msra.mxu0 0.0
  %250 = vmatprep.subr.mxu0 0.0
  %251 = vmatpush1.msra.mxu0 0.0
  %252 = vmatprep.subr.mxu0 0.0
  %253 = vmatpush1.msra.mxu0 0.0
  %254 = vmatprep.subr.mxu0 0.0
  %255 = vmatpush1.msra.mxu0 0.0
  %256 = vmatprep.subr.mxu0 0.0
  %257 = vmatpush1.msra.mxu0 0.0
  %258 = vmatprep.subr.mxu0 0.0
  %259 = vmatpush1.msra.mxu0 0.0
  %260 = vmatprep.subr.mxu0 0.0
  %261 = vmatpush1.msra.mxu0 0.0
  %262 = vmatprep.subr.mxu0 0.0
  %263 = vmatpush1.msra.mxu0 0.0
  %264 = vmatprep.subr.mxu0 0.0
  %265 = vmatpush1.msra.mxu0 0.0
  %266 = vmatprep.subr.mxu0 0.0
  %267 = vmatpush1.msra.mxu0 0.0
  %268 = vmatprep.subr.mxu0 0.0
  %269 = vmatpush1.msra.mxu0 0.0
  %270 = vmatprep.subr.mxu0 0.0
  %271 = vmatpush1.msra.mxu0 0.0
  %272 = vmatprep.subr.mxu0 0.0
  %273 = vmatpush1.msra.mxu0 0.0
  %274 = vmatprep.subr.mxu0 0.0
  %275 = vmatpush1.msra.mxu0 0.0
  %276 = vmatprep.subr.mxu0 0.0
  %277 = vmatpush1.msra.mxu0 0.0
  %278 = vmatprep.subr.mxu0 0.0
  %279 = vmatpush1.msra.mxu0 0.0
  %280 = vmatprep.mubr.f32.mxu0 0.0
  %281 = vmatmul.mubr.f32.gmra.mrb[0].mxu0 %v214
  %v282 = vpop.f32.mrb[0].mxu0
  %v283 = vadd.f32 0.0, %v282
  %v284 = vpop.f32.mrb[0].mxu0
  %285 = vdwg.mxu0
  %v287 = vrot.slane %v283, 1
  %v290 = vadd.f32 %v207, %v283
  %v291 = vadd.f32 %v208, %v287
  %v292 = vtanh.pop %v290
  %v293 = vtanh.pop %v291
  %294 = vst.msk [vmem:[%s5 + $0x1] sm:$0x1] %vm204, %v292
  %295 = vst.msk [vmem:[%s5 + $0x9] sm:$0x1] %vm204, %v293
  %v296 = vld [vmem:[%s5 + $0x2] sm:$0x1]
  %v297 = vld [vmem:[%s5 + $0xa] sm:$0x1]
  %v300 = vrot.slane %v293, 7
  %v301 = vsel %vm212, %v300, %v292
  %v302 = vsel %vm113, %v301, 0
  %304 = vmatprep.subr.mxu0 0.0
  %305 = vmatpush1.msra.mxu0 %v116
  %306 = vmatprep.subr.mxu0 0.0
  %307 = vmatpush1.msra.mxu0 %v117
  %308 = vmatprep.subr.mxu0 0.0
  %309 = vmatpush1.msra.mxu0 %v118
  %310 = vmatprep.subr.mxu0 0.0
  %311 = vmatpush1.msra.mxu0 %v119
  %312 = vmatprep.subr.mxu0 0.0
  %313 = vmatpush1.msra.mxu0 0.0
  %314 = vmatprep.subr.mxu0 0.0
  %315 = vmatpush1.msra.mxu0 0.0
  %316 = vmatprep.subr.mxu0 0.0
  %317 = vmatpush1.msra.mxu0 0.0
  %318 = vmatprep.subr.mxu0 0.0
  %319 = vmatpush1.msra.mxu0 0.0
  %320 = vmatprep.subr.mxu0 0.0
  %321 = vmatpush1.msra.mxu0 0.0
  %322 = vmatprep.subr.mxu0 0.0
  %323 = vmatpush1.msra.mxu0 0.0
  %324 = vmatprep.subr.mxu0 0.0
  %325 = vmatpush1.msra.mxu0 0.0
  %326 = vmatprep.subr.mxu0 0.0
  %327 = vmatpush1.msra.mxu0 0.0
  %328 = vmatprep.subr.mxu0 0.0
  %329 = vmatpush1.msra.mxu0 0.0
  %330 = vmatprep.subr.mxu0 0.0
  %331 = vmatpush1.msra.mxu0 0.0
  %332 = vmatprep.subr.mxu0 0.0
  %333 = vmatpush1.msra.mxu0 0.0
  %334 = vmatprep.subr.mxu0 0.0
  %335 = vmatpush1.msra.mxu0 0.0
  %336 = vmatprep.subr.mxu0 0.0
  %337 = vmatpush1.msra.mxu0 0.0
  %338 = vmatprep.subr.mxu0 0.0
  %339 = vmatpush1.msra.mxu0 0.0
  %340 = vmatprep.subr.mxu0 0.0
  %341 = vmatpush1.msra.mxu0 0.0
  %342 = vmatprep.subr.mxu0 0.0
  %343 = vmatpush1.msra.mxu0 0.0
  %344 = vmatprep.subr.mxu0 0.0
  %345 = vmatpush1.msra.mxu0 0.0
  %346 = vmatprep.subr.mxu0 0.0
  %347 = vmatpush1.msra.mxu0 0.0
  %348 = vmatprep.subr.mxu0 0.0
  %349 = vmatpush1.msra.mxu0 0.0
  %350 = vmatprep.subr.mxu0 0.0
  %351 = vmatpush1.msra.mxu0 0.0
  %352 = vmatprep.subr.mxu0 0.0
  %353 = vmatpush1.msra.mxu0 0.0
  %354 = vmatprep.subr.mxu0 0.0
  %355 = vmatpush1.msra.mxu0 0.0
  %356 = vmatprep.subr.mxu0 0.0
  %357 = vmatpush1.msra.mxu0 0.0
  %358 = vmatprep.subr.mxu0 0.0
  %359 = vmatpush1.msra.mxu0 0.0
  %360 = vmatprep.subr.mxu0 0.0
  %361 = vmatpush1.msra.mxu0 0.0
  %362 = vmatprep.subr.mxu0 0.0
  %363 = vmatpush1.msra.mxu0 0.0
  %364 = vmatprep.subr.mxu0 0.0
  %365 = vmatpush1.msra.mxu0 0.0
  %366 = vmatprep.subr.mxu0 0.0
  %367 = vmatpush1.msra.mxu0 0.0
  %368 = vmatprep.mubr.f32.mxu0 0.0
  %369 = vmatmul.mubr.f32.gmra.mrb[0].mxu0 %v302
  %v370 = vpop.f32.mrb[0].mxu0
  %v371 = vadd.f32 0.0, %v370
  %v372 = vpop.f32.mrb[0].mxu0
  %373 = vdwg.mxu0
  %v375 = vrot.slane %v371, 1
  %v378 = vadd.f32 %v296, %v371
  %v379 = vadd.f32 %v297, %v375
  %v380 = vtanh.pop %v378
  %v381 = vtanh.pop %v379
  %382 = vst.msk [vmem:[%s5 + $0x2] sm:$0x1] %vm204, %v380
  %383 = vst.msk [vmem:[%s5 + $0xa] sm:$0x1] %vm204, %v381
  %v384 = vld [vmem:[%s5 + $0x3] sm:$0x1]
  %v385 = vld [vmem:[%s5 + $0xb] sm:$0x1]
  %v388 = vrot.slane %v381, 7
  %v389 = vsel %vm212, %v388, %v380
  %v390 = vsel %vm113, %v389, 0
  %392 = vmatprep.subr.mxu0 0.0
  %393 = vmatpush1.msra.mxu0 %v116
  %394 = vmatprep.subr.mxu0 0.0
  %395 = vmatpush1.msra.mxu0 %v117
  %396 = vmatprep.subr.mxu0 0.0
  %397 = vmatpush1.msra.mxu0 %v118
  %398 = vmatprep.subr.mxu0 0.0
  %399 = vmatpush1.msra.mxu0 %v119
  %400 = vmatprep.subr.mxu0 0.0
  %401 = vmatpush1.msra.mxu0 0.0
  %402 = vmatprep.subr.mxu0 0.0
  %403 = vmatpush1.msra.mxu0 0.0
  %404 = vmatprep.subr.mxu0 0.0
  %405 = vmatpush1.msra.mxu0 0.0
  %406 = vmatprep.subr.mxu0 0.0
  %407 = vmatpush1.msra.mxu0 0.0
  %408 = vmatprep.subr.mxu0 0.0
  %409 = vmatpush1.msra.mxu0 0.0
  %410 = vmatprep.subr.mxu0 0.0
  %411 = vmatpush1.msra.mxu0 0.0
  %412 = vmatprep.subr.mxu0 0.0
  %413 = vmatpush1.msra.mxu0 0.0
  %414 = vmatprep.subr.mxu0 0.0
  %415 = vmatpush1.msra.mxu0 0.0
  %416 = vmatprep.subr.mxu0 0.0
  %417 = vmatpush1.msra.mxu0 0.0
  %418 = vmatprep.subr.mxu0 0.0
  %419 = vmatpush1.msra.mxu0 0.0
  %420 = vmatprep.subr.mxu0 0.0
  %421 = vmatpush1.msra.mxu0 0.0
  %422 = vmatprep.subr.mxu0 0.0
  %423 = vmatpush1.msra.mxu0 0.0
  %424 = vmatprep.subr.mxu0 0.0
  %425 = vmatpush1.msra.mxu0 0.0
  %426 = vmatprep.subr.mxu0 0.0
  %427 = vmatpush1.msra.mxu0 0.0
  %428 = vmatprep.subr.mxu0 0.0
  %429 = vmatpush1.msra.mxu0 0.0
  %430 = vmatprep.subr.mxu0 0.0
  %431 = vmatpush1.msra.mxu0 0.0
  %432 = vmatprep.subr.mxu0 0.0
  %433 = vmatpush1.msra.mxu0 0.0
  %434 = vmatprep.subr.mxu0 0.0
  %435 = vmatpush1.msra.mxu0 0.0
  %436 = vmatprep.subr.mxu0 0.0
  %437 = vmatpush1.msra.mxu0 0.0
  %438 = vmatprep.subr.mxu0 0.0
  %439 = vmatpush1.msra.mxu0 0.0
  %440 = vmatprep.subr.mxu0 0.0
  %441 = vmatpush1.msra.mxu0 0.0
  %442 = vmatprep.subr.mxu0 0.0
  %443 = vmatpush1.msra.mxu0 0.0
  %444 = vmatprep.subr.mxu0 0.0
  %445 = vmatpush1.msra.mxu0 0.0
  %446 = vmatprep.subr.mxu0 0.0
  %447 = vmatpush1.msra.mxu0 0.0
  %448 = vmatprep.subr.mxu0 0.0
  %449 = vmatpush1.msra.mxu0 0.0
  %450 = vmatprep.subr.mxu0 0.0
  %451 = vmatpush1.msra.mxu0 0.0
  %452 = vmatprep.subr.mxu0 0.0
  %453 = vmatpush1.msra.mxu0 0.0
  %454 = vmatprep.subr.mxu0 0.0
  %455 = vmatpush1.msra.mxu0 0.0
  %456 = vmatprep.mubr.f32.mxu0 0.0
  %457 = vmatmul.mubr.f32.gmra.mrb[0].mxu0 %v390
  %v458 = vpop.f32.mrb[0].mxu0
  %v459 = vadd.f32 0.0, %v458
  %v460 = vpop.f32.mrb[0].mxu0
  %461 = vdwg.mxu0
  %v463 = vrot.slane %v459, 1
  %v466 = vadd.f32 %v384, %v459
  %v467 = vadd.f32 %v385, %v463
  %v468 = vtanh.pop %v466
  %v469 = vtanh.pop %v467
  %470 = vst.msk [vmem:[%s5 + $0x3] sm:$0x1] %vm204, %v468
  %471 = vst.msk [vmem:[%s5 + $0xb] sm:$0x1] %vm204, %v469
  %v472 = vld [vmem:[%s5 + $0x4] sm:$0x1]
  %v473 = vld [vmem:[%s5 + $0xc] sm:$0x1]
  %v476 = vrot.slane %v469, 7
  %v477 = vsel %vm212, %v476, %v468
  %v478 = vsel %vm113, %v477, 0
  %480 = vmatprep.subr.mxu0 0.0
  %481 = vmatpush1.msra.mxu0 %v116
  %482 = vmatprep.subr.mxu0 0.0
  %483 = vmatpush1.msra.mxu0 %v117
  %484 = vmatprep.subr.mxu0 0.0
  %485 = vmatpush1.msra.mxu0 %v118
  %486 = vmatprep.subr.mxu0 0.0
  %487 = vmatpush1.msra.mxu0 %v119
  %488 = vmatprep.subr.mxu0 0.0
  %489 = vmatpush1.msra.mxu0 0.0
  %490 = vmatprep.subr.mxu0 0.0
  %491 = vmatpush1.msra.mxu0 0.0
  %492 = vmatprep.subr.mxu0 0.0
  %493 = vmatpush1.msra.mxu0 0.0
  %494 = vmatprep.subr.mxu0 0.0
  %495 = vmatpush1.msra.mxu0 0.0
  %496 = vmatprep.subr.mxu0 0.0
  %497 = vmatpush1.msra.mxu0 0.0
  %498 = vmatprep.subr.mxu0 0.0
  %499 = vmatpush1.msra.mxu0 0.0
  %500 = vmatprep.subr.mxu0 0.0
  %501 = vmatpush1.msra.mxu0 0.0
  %502 = vmatprep.subr.mxu0 0.0
  %503 = vmatpush1.msra.mxu0 0.0
  %504 = vmatprep.subr.mxu0 0.0
  %505 = vmatpush1.msra.mxu0 0.0
  %506 = vmatprep.subr.mxu0 0.0
  %507 = vmatpush1.msra.mxu0 0.0
  %508 = vmatprep.subr.mxu0 0.0
  %509 = vmatpush1.msra.mxu0 0.0
  %510 = vmatprep.subr.mxu0 0.0
  %511 = vmatpush1.msra.mxu0 0.0
  %512 = vmatprep.subr.mxu0 0.0
  %513 = vmatpush1.msra.mxu0 0.0
  %514 = vmatprep.subr.mxu0 0.0
  %515 = vmatpush1.msra.mxu0 0.0
  %516 = vmatprep.subr.mxu0 0.0
  %517 = vmatpush1.msra.mxu0 0.0
  %518 = vmatprep.subr.mxu0 0.0
  %519 = vmatpush1.msra.mxu0 0.0
  %520 = vmatprep.subr.mxu0 0.0
  %521 = vmatpush1.msra.mxu0 0.0
  %522 = vmatprep.subr.mxu0 0.0
  %523 = vmatpush1.msra.mxu0 0.0
  %524 = vmatprep.subr.mxu0 0.0
  %525 = vmatpush1.msra.mxu0 0.0
  %526 = vmatprep.subr.mxu0 0.0
  %527 = vmatpush1.msra.mxu0 0.0
  %528 = vmatprep.subr.mxu0 0.0
  %529 = vmatpush1.msra.mxu0 0.0
  %530 = vmatprep.subr.mxu0 0.0
  %531 = vmatpush1.msra.mxu0 0.0
  %532 = vmatprep.subr.mxu0 0.0
  %533 = vmatpush1.msra.mxu0 0.0
  %534 = vmatprep.subr.mxu0 0.0
  %535 = vmatpush1.msra.mxu0 0.0
  %536 = vmatprep.subr.mxu0 0.0
  %537 = vmatpush1.msra.mxu0 0.0
  %538 = vmatprep.subr.mxu0 0.0
  %539 = vmatpush1.msra.mxu0 0.0
  %540 = vmatprep.subr.mxu0 0.0
  %541 = vmatpush1.msra.mxu0 0.0
  %542 = vmatprep.subr.mxu0 0.0
  %543 = vmatpush1.msra.mxu0 0.0
  %544 = vmatprep.mubr.f32.mxu0 0.0
  %545 = vmatmul.mubr.f32.gmra.mrb[0].mxu0 %v478
  %v546 = vpop.f32.mrb[0].mxu0
  %v547 = vadd.f32 0.0, %v546
  %v548 = vpop.f32.mrb[0].mxu0
  %549 = vdwg.mxu0
  %v551 = vrot.slane %v547, 1
  %v554 = vadd.f32 %v472, %v547
  %v555 = vadd.f32 %v473, %v551
  %v556 = vtanh.pop %v554
  %v557 = vtanh.pop %v555
  %558 = vst.msk [vmem:[%s5 + $0x4] sm:$0x1] %vm204, %v556
  %559 = vst.msk [vmem:[%s5 + $0xc] sm:$0x1] %vm204, %v557
  %v560 = vld [vmem:[%s5 + $0x5] sm:$0x1]
  %v561 = vld [vmem:[%s5 + $0xd] sm:$0x1]
  %v564 = vrot.slane %v557, 7
  %v565 = vsel %vm212, %v564, %v556
  %v566 = vsel %vm113, %v565, 0
  %568 = vmatprep.subr.mxu0 0.0
  %569 = vmatpush1.msra.mxu0 %v116
  %570 = vmatprep.subr.mxu0 0.0
  %571 = vmatpush1.msra.mxu0 %v117
  %572 = vmatprep.subr.mxu0 0.0
  %573 = vmatpush1.msra.mxu0 %v118
  %574 = vmatprep.subr.mxu0 0.0
  %575 = vmatpush1.msra.mxu0 %v119
  %576 = vmatprep.subr.mxu0 0.0
  %577 = vmatpush1.msra.mxu0 0.0
  %578 = vmatprep.subr.mxu0 0.0
  %579 = vmatpush1.msra.mxu0 0.0
  %580 = vmatprep.subr.mxu0 0.0
  %581 = vmatpush1.msra.mxu0 0.0
  %582 = vmatprep.subr.mxu0 0.0
  %583 = vmatpush1.msra.mxu0 0.0
  %584 = vmatprep.subr.mxu0 0.0
  %585 = vmatpush1.msra.mxu0 0.0
  %586 = vmatprep.subr.mxu0 0.0
  %587 = vmatpush1.msra.mxu0 0.0
  %588 = vmatprep.subr.mxu0 0.0
  %589 = vmatpush1.msra.mxu0 0.0
  %590 = vmatprep.subr.mxu0 0.0
  %591 = vmatpush1.msra.mxu0 0.0
  %592 = vmatprep.subr.mxu0 0.0
  %593 = vmatpush1.msra.mxu0 0.0
  %594 = vmatprep.subr.mxu0 0.0
  %595 = vmatpush1.msra.mxu0 0.0
  %596 = vmatprep.subr.mxu0 0.0
  %597 = vmatpush1.msra.mxu0 0.0
  %598 = vmatprep.subr.mxu0 0.0
  %599 = vmatpush1.msra.mxu0 0.0
  %600 = vmatprep.subr.mxu0 0.0
  %601 = vmatpush1.msra.mxu0 0.0
  %602 = vmatprep.subr.mxu0 0.0
  %603 = vmatpush1.msra.mxu0 0.0
  %604 = vmatprep.subr.mxu0 0.0
  %605 = vmatpush1.msra.mxu0 0.0
  %606 = vmatprep.subr.mxu0 0.0
  %607 = vmatpush1.msra.mxu0 0.0
  %608 = vmatprep.subr.mxu0 0.0
  %609 = vmatpush1.msra.mxu0 0.0
  %610 = vmatprep.subr.mxu0 0.0
  %611 = vmatpush1.msra.mxu0 0.0
  %612 = vmatprep.subr.mxu0 0.0
  %613 = vmatpush1.msra.mxu0 0.0
  %614 = vmatprep.subr.mxu0 0.0
  %615 = vmatpush1.msra.mxu0 0.0
  %616 = vmatprep.subr.mxu0 0.0
  %617 = vmatpush1.msra.mxu0 0.0
  %618 = vmatprep.subr.mxu0 0.0
  %619 = vmatpush1.msra.mxu0 0.0
  %620 = vmatprep.subr.mxu0 0.0
  %621 = vmatpush1.msra.mxu0 0.0
  %622 = vmatprep.subr.mxu0 0.0
  %623 = vmatpush1.msra.mxu0 0.0
  %624 = vmatprep.subr.mxu0 0.0
  %625 = vmatpush1.msra.mxu0 0.0
  %626 = vmatprep.subr.mxu0 0.0
  %627 = vmatpush1.msra.mxu0 0.0
  %628 = vmatprep.subr.mxu0 0.0
  %629 = vmatpush1.msra.mxu0 0.0
  %630 = vmatprep.subr.mxu0 0.0
  %631 = vmatpush1.msra.mxu0 0.0
  %632 = vmatprep.mubr.f32.mxu0 0.0
  %633 = vmatmul.mubr.f32.gmra.mrb[0].mxu0 %v566
  %v634 = vpop.f32.mrb[0].mxu0
  %v635 = vadd.f32 0.0, %v634
  %v636 = vpop.f32.mrb[0].mxu0
  %637 = vdwg.mxu0
  %v639 = vrot.slane %v635, 1
  %v642 = vadd.f32 %v560, %v635
  %v643 = vadd.f32 %v561, %v639
  %v644 = vtanh.pop %v642
  %v645 = vtanh.pop %v643
  %646 = vst.msk [vmem:[%s5 + $0x5] sm:$0x1] %vm204, %v644
  %647 = vst.msk [vmem:[%s5 + $0xd] sm:$0x1] %vm204, %v645
  %v648 = vld [vmem:[%s5 + $0x6] sm:$0x1]
  %v649 = vld [vmem:[%s5 + $0xe] sm:$0x1]
  %v652 = vrot.slane %v645, 7
  %v653 = vsel %vm212, %v652, %v644
  %v654 = vsel %vm113, %v653, 0
  %656 = vmatprep.subr.mxu0 0.0
  %657 = vmatpush1.msra.mxu0 %v116
  %658 = vmatprep.subr.mxu0 0.0
  %659 = vmatpush1.msra.mxu0 %v117
  %660 = vmatprep.subr.mxu0 0.0
  %661 = vmatpush1.msra.mxu0 %v118
  %662 = vmatprep.subr.mxu0 0.0
  %663 = vmatpush1.msra.mxu0 %v119
  %664 = vmatprep.subr.mxu0 0.0
  %665 = vmatpush1.msra.mxu0 0.0
  %666 = vmatprep.subr.mxu0 0.0
  %667 = vmatpush1.msra.mxu0 0.0
  %668 = vmatprep.subr.mxu0 0.0
  %669 = vmatpush1.msra.mxu0 0.0
  %670 = vmatprep.subr.mxu0 0.0
  %671 = vmatpush1.msra.mxu0 0.0
  %672 = vmatprep.subr.mxu0 0.0
  %673 = vmatpush1.msra.mxu0 0.0
  %674 = vmatprep.subr.mxu0 0.0
  %675 = vmatpush1.msra.mxu0 0.0
  %676 = vmatprep.subr.mxu0 0.0
  %677 = vmatpush1.msra.mxu0 0.0
  %678 = vmatprep.subr.mxu0 0.0
  %679 = vmatpush1.msra.mxu0 0.0
  %680 = vmatprep.subr.mxu0 0.0
  %681 = vmatpush1.msra.mxu0 0.0
  %682 = vmatprep.subr.mxu0 0.0
  %683 = vmatpush1.msra.mxu0 0.0
  %684 = vmatprep.subr.mxu0 0.0
  %685 = vmatpush1.msra.mxu0 0.0
  %686 = vmatprep.subr.mxu0 0.0
  %687 = vmatpush1.msra.mxu0 0.0
  %688 = vmatprep.subr.mxu0 0.0
  %689 = vmatpush1.msra.mxu0 0.0
  %690 = vmatprep.subr.mxu0 0.0
  %691 = vmatpush1.msra.mxu0 0.0
  %692 = vmatprep.subr.mxu0 0.0
  %693 = vmatpush1.msra.mxu0 0.0
  %694 = vmatprep.subr.mxu0 0.0
  %695 = vmatpush1.msra.mxu0 0.0
  %696 = vmatprep.subr.mxu0 0.0
  %697 = vmatpush1.msra.mxu0 0.0
  %698 = vmatprep.subr.mxu0 0.0
  %699 = vmatpush1.msra.mxu0 0.0
  %700 = vmatprep.subr.mxu0 0.0
  %701 = vmatpush1.msra.mxu0 0.0
  %702 = vmatprep.subr.mxu0 0.0
  %703 = vmatpush1.msra.mxu0 0.0
  %704 = vmatprep.subr.mxu0 0.0
  %705 = vmatpush1.msra.mxu0 0.0
  %706 = vmatprep.subr.mxu0 0.0
  %707 = vmatpush1.msra.mxu0 0.0
  %708 = vmatprep.subr.mxu0 0.0
  %709 = vmatpush1.msra.mxu0 0.0
  %710 = vmatprep.subr.mxu0 0.0
  %711 = vmatpush1.msra.mxu0 0.0
  %712 = vmatprep.subr.mxu0 0.0
  %713 = vmatpush1.msra.mxu0 0.0
  %714 = vmatprep.subr.mxu0 0.0
  %715 = vmatpush1.msra.mxu0 0.0
  %716 = vmatprep.subr.mxu0 0.0
  %717 = vmatpush1.msra.mxu0 0.0
  %718 = vmatprep.subr.mxu0 0.0
  %719 = vmatpush1.msra.mxu0 0.0
  %720 = vmatprep.mubr.f32.mxu0 0.0
  %721 = vmatmul.mubr.f32.gmra.mrb[0].mxu0 %v654
  %v722 = vpop.f32.mrb[0].mxu0
  %v723 = vadd.f32 0.0, %v722
  %v724 = vpop.f32.mrb[0].mxu0
  %725 = vdwg.mxu0
  %v727 = vrot.slane %v723, 1
  %v730 = vadd.f32 %v648, %v723
  %v731 = vadd.f32 %v649, %v727
  %v732 = vtanh.pop %v730
  %v733 = vtanh.pop %v731
  %734 = vst.msk [vmem:[%s5 + $0x6] sm:$0x1] %vm204, %v732
  %735 = vst.msk [vmem:[%s5 + $0xe] sm:$0x1] %vm204, %v733
  %v736 = vld [vmem:[%s5 + $0x7] sm:$0x1]
  %v737 = vld [vmem:[%s5 + $0xf] sm:$0x1]
  %v740 = vrot.slane %v733, 7
  %v741 = vsel %vm212, %v740, %v732
  %v742 = vsel %vm113, %v741, 0
  %744 = vmatprep.subr.mxu0 0.0
  %745 = vmatpush1.msra.mxu0 %v116
  %746 = vmatprep.subr.mxu0 0.0
  %747 = vmatpush1.msra.mxu0 %v117
  %748 = vmatprep.subr.mxu0 0.0
  %749 = vmatpush1.msra.mxu0 %v118
  %750 = vmatprep.subr.mxu0 0.0
  %751 = vmatpush1.msra.mxu0 %v119
  %752 = vmatprep.subr.mxu0 0.0
  %753 = vmatpush1.msra.mxu0 0.0
  %754 = vmatprep.subr.mxu0 0.0
  %755 = vmatpush1.msra.mxu0 0.0
  %756 = vmatprep.subr.mxu0 0.0
  %757 = vmatpush1.msra.mxu0 0.0
  %758 = vmatprep.subr.mxu0 0.0
  %759 = vmatpush1.msra.mxu0 0.0
  %760 = vmatprep.subr.mxu0 0.0
  %761 = vmatpush1.msra.mxu0 0.0
  %762 = vmatprep.subr.mxu0 0.0
  %763 = vmatpush1.msra.mxu0 0.0
  %764 = vmatprep.subr.mxu0 0.0
  %765 = vmatpush1.msra.mxu0 0.0
  %766 = vmatprep.subr.mxu0 0.0
  %767 = vmatpush1.msra.mxu0 0.0
  %768 = vmatprep.subr.mxu0 0.0
  %769 = vmatpush1.msra.mxu0 0.0
  %770 = vmatprep.subr.mxu0 0.0
  %771 = vmatpush1.msra.mxu0 0.0
  %772 = vmatprep.subr.mxu0 0.0
  %773 = vmatpush1.msra.mxu0 0.0
  %774 = vmatprep.subr.mxu0 0.0
  %775 = vmatpush1.msra.mxu0 0.0
  %776 = vmatprep.subr.mxu0 0.0
  %777 = vmatpush1.msra.mxu0 0.0
  %778 = vmatprep.subr.mxu0 0.0
  %779 = vmatpush1.msra.mxu0 0.0
  %780 = vmatprep.subr.mxu0 0.0
  %781 = vmatpush1.msra.mxu0 0.0
  %782 = vmatprep.subr.mxu0 0.0
  %783 = vmatpush1.msra.mxu0 0.0
  %784 = vmatprep.subr.mxu0 0.0
  %785 = vmatpush1.msra.mxu0 0.0
  %786 = vmatprep.subr.mxu0 0.0
  %787 = vmatpush1.msra.mxu0 0.0
  %788 = vmatprep.subr.mxu0 0.0
  %789 = vmatpush1.msra.mxu0 0.0
  %790 = vmatprep.subr.mxu0 0.0
  %791 = vmatpush1.msra.mxu0 0.0
  %792 = vmatprep.subr.mxu0 0.0
  %793 = vmatpush1.msra.mxu0 0.0
  %794 = vmatprep.subr.mxu0 0.0
  %795 = vmatpush1.msra.mxu0 0.0
  %796 = vmatprep.subr.mxu0 0.0
  %797 = vmatpush1.msra.mxu0 0.0
  %798 = vmatprep.subr.mxu0 0.0
  %799 = vmatpush1.msra.mxu0 0.0
  %800 = vmatprep.subr.mxu0 0.0
  %801 = vmatpush1.msra.mxu0 0.0
  %802 = vmatprep.subr.mxu0 0.0
  %803 = vmatpush1.msra.mxu0 0.0
  %804 = vmatprep.subr.mxu0 0.0
  %805 = vmatpush1.msra.mxu0 0.0
  %806 = vmatprep.subr.mxu0 0.0
  %807 = vmatpush1.msra.mxu0 0.0
  %808 = vmatprep.mubr.f32.mxu0 0.0
  %809 = vmatmul.mubr.f32.gmra.mrb[0].mxu0 %v742
  %v810 = vpop.f32.mrb[0].mxu0
  %v811 = vadd.f32 0.0, %v810
  %v812 = vpop.f32.mrb[0].mxu0
  %813 = vdwg.mxu0
  %v815 = vrot.slane %v811, 1
  %v818 = vadd.f32 %v736, %v811
  %v819 = vadd.f32 %v737, %v815
  %v820 = vtanh.pop %v818
  %v821 = vtanh.pop %v819
  %822 = vst.msk [vmem:[%s5 + $0x7] sm:$0x1] %vm204, %v820
  %823 = vst.msk [vmem:[%s5 + $0xf] sm:$0x1] %vm204, %v821
  // Predicated region
  $region22: #{rnn_forward.1} parent=0 // pred_check
    _
  $region23: #{rnn_forward.1} parent=0 // pred_check_branch
    %825 = sbr.rel (0) target = $region25
  $region24: #{rnn_forward.1} parent=0 // pred_region
    _
  $region25: #{rnn_forward.1} parent=0 // pred_fallthru
    _
  // Predicated region
  $region26: #{rnn_forward.1} parent=0 // pred_check
    _
  $region27: #{rnn_forward.1} parent=0 // pred_check_branch
    %827 = sbr.rel (0) target = $region29
  $region28: #{rnn_forward.1} parent=0 // pred_region
    _
  $region29: #{rnn_forward.1} parent=0 // pred_fallthru
    _

</llo_original>
